<compile_context>
chip_gen: v6e
topology: v6e:2x2x1
jax: 0.10.0
libtpu: 0.0.40
codegen_flags: <defaults>
</compile_context>

<pallas_src>
import functools

import jax
import jax.numpy as jnp
from jax.experimental import pallas as pl
from jax.experimental.pallas import tpu as pltpu

NORM_EPS = 1e-12   # F.normalize eps
PDIST_EPS = 1e-6   # F.pairwise_distance eps


def triplet_kernel(ae_ref, pb_ref, pq_ref, hinge_ref, negidx_ref, *, margin, n_valid):
    """One TM-row block of the triplet loss.

    ae_ref     : (TM, Dpad)   f32   normalized anchors + eps, zero-padded
    pb_ref     : (TM, Dpad)   f32   normalized positives (same rows), zero-padded
    pq_ref     : (Dpad, Npad) bf16  all normalized positives, transposed (gram RHS, resident)
    hinge_ref  : (TM, 1)      f32   per-row hinge relu(pos_d2 - neg_d2 + margin)
    negidx_ref : (TM, 1)      i32   mined hardest-negative index
    """
    TM = ae_ref.shape[0]
    npad = pq_ref.shape[1]

    ae = ae_ref[...]                    # (TM, Dpad) f32
    pb = pb_ref[...]                    # (TM, Dpad) f32

    # Exact f32 per-row terms.  Padded columns are zero in both operands, so
    # they contribute nothing:
    #   pos_d2 = ||an_i - pn_i + eps||^2,   ae_sq = ||an_i + eps||^2
    diff = ae - pb
    pos_d2 = jnp.sum(diff * diff, axis=1, keepdims=True)           # (TM, 1)
    ae_sq = jnp.sum(ae * ae, axis=1, keepdims=True)                # (TM, 1)

    # MXU gram, bf16 operands / f32 accumulation.  Because eps is pre-folded
    # into the anchor:  g[i,j] = (an_i + eps) . pn_j, which is exactly the
    # j-dependent part of -d2[i,j]/2 (normalization already folded in).
    gram = jnp.dot(ae.astype(jnp.bfloat16), pq_ref[...],
                   preferred_element_type=jnp.float32)              # (TM, Npad)

    # Hardest-negative mining: argmax_j g[i,j] == argmin_j d2[i,j], j != i,
    # padded columns excluded.  Column iota kept lane-shaped (1, Npad).
    i0 = pl.program_id(0) * TM
    row_ids = i0 + jax.lax.broadcasted_iota(jnp.int32, (TM, 1), 0)   # (TM, 1)
    col = jax.lax.broadcasted_iota(jnp.int32, (1, npad), 1)          # (1, Npad)
    invalid = col == row_ids
    if n_valid < npad:                                               # static branch
        invalid = invalid | (col >= n_valid)
    masked = jnp.where(invalid, -jnp.inf, gram)

    max_val = jnp.max(masked, axis=1, keepdims=True)                 # (TM, 1)
    negidx = jnp.min(jnp.where(masked >= max_val, col, npad),
                     axis=1, keepdims=True)                          # (TM, 1) int32

    # d2[i,j] = ||an_i + eps||^2 + ||pn_j||^2 - 2 g[i,j]  with ||pn_j||^2 == 1.
    # Clamp against tiny negatives from bf16-gram cancellation near zero.
    neg_d2 = jnp.maximum(ae_sq + 1.0 - 2.0 * max_val, 0.0)

    hinge_ref[...] = jnp.maximum(pos_d2 - neg_d2 + margin, 0.0)
    # (TM, 1) outputs lower to masked single-lane stores; total store volume is
    # only O(N), negligible next to the O(N^2 D) / O(N^2) tile work.
    negidx_ref[...] = negidx.astype(jnp.int32)


def _round_up(x, m):
    return -(-x // m) * m


def _pick_block_rows(n):
    """Row-block size.  Preference order: no row padding, an even block count
    (balances the 2 TensorCores on megacore/v7x), >= 2 blocks, least padding,
    largest block.  TM capped at 128 for large N so the (TM, Npad) f32
    temporaries stay VMEM-friendly on v7x (64 MiB)."""
    cands = (256, 128, 64, 32, 16, 8) if n < 4096 else (128, 64, 32)

    def score(tm):
        g = -(-n // tm)
        pad = g * tm - n
        return (pad > 0, g % 2 != 0, g < 2, pad, -tm)

    return min(cands, key=score)


@functools.partial(jax.jit, static_argnames=("margin",))
def triplet_loss_pallas(x, margin=0.0):
    """x: (N, 2, D) float32.  Returns (nloss scalar f32, negidx (N,) int32)."""
    N, two, D = x.shape
    assert two == 2

    # ---- O(N*D) prep: normalize, fold eps, pad, cast (runs once, tiny) ------
    a = x[:, 0, :].astype(jnp.float32)
    p = x[:, 1, :].astype(jnp.float32)
    an = a / jnp.maximum(jnp.sqrt(jnp.sum(a * a, axis=1, keepdims=True)), NORM_EPS)
    pn = p / jnp.maximum(jnp.sqrt(jnp.sum(p * p, axis=1, keepdims=True)), NORM_EPS)
    ae = an + PDIST_EPS      # ||an - pn + eps||^2 == ||(an + eps) - pn||^2

    TM = _pick_block_rows(N)
    G = -(-N // TM)
    n_pad = G * TM                      # batch padded so the grid splits evenly
    d_pad = _round_up(D, 128)           # lane-aligned feature dim

    ae_pad = jnp.zeros((n_pad, d_pad), jnp.float32).at[:N, :D].set(ae)
    pn_pad = jnp.zeros((n_pad, d_pad), jnp.float32).at[:N, :D].set(pn)
    pq = pn_pad.astype(jnp.bfloat16).T  # (Dpad, Npad) resident MXU RHS

    cost = pl.CostEstimate(
        flops=int(2 * n_pad * n_pad * d_pad + 10 * n_pad * n_pad),
        transcendentals=0,
        bytes_accessed=int(2 * n_pad * d_pad * 4 + n_pad * d_pad * 2 + n_pad * 8))

    # Explicit VMEM budget (v7x: 64 MiB physical / 32 MiB default scoped).
    vmem_est = (2 * 2 * TM * d_pad * 4      # double-buffered f32 row blocks
                + 2 * n_pad * d_pad * 2     # resident bf16 positives
                + 6 * TM * n_pad * 4)       # (TM, Npad) temporaries headroom
    vmem_limit = int(min(max(2 * vmem_est, 32 * 1024 * 1024), 64 * 1024 * 1024))

    hinge, negidx = pl.pallas_call(
        functools.partial(triplet_kernel, margin=float(margin), n_valid=N),
        grid=(G,),
        in_specs=[
            pl.BlockSpec((TM, d_pad), lambda i: (i, 0)),      # anchor(+eps) block, pipelined
            pl.BlockSpec((TM, d_pad), lambda i: (i, 0)),      # positive block, pipelined
            pl.BlockSpec((d_pad, n_pad), lambda i: (0, 0)),   # bf16 positives^T, resident
        ],
        out_specs=(
            pl.BlockSpec((TM, 1), lambda i: (i, 0)),
            pl.BlockSpec((TM, 1), lambda i: (i, 0)),
        ),
        out_shape=(
            jax.ShapeDtypeStruct((n_pad, 1), jnp.float32),
            jax.ShapeDtypeStruct((n_pad, 1), jnp.int32),
        ),
        # Row blocks are independent -> shard across TensorCores.
        compiler_params=pltpu.CompilerParams(
            dimension_semantics=("parallel",),
            vmem_limit_bytes=vmem_limit),
        cost_estimate=cost,
    )(ae_pad, pn_pad, pq)

    # Padded rows are excluded from the mean (divide by the true batch size).
    nloss = jnp.sum(hinge[:N, 0]) / N
    return nloss, negidx[:N, 0]


def triplet_loss_reference(x, margin=0.0):
    """Pure-JAX f32 reference mirroring the PyTorch forward (deterministic mining)."""
    a = x[:, 0, :].astype(jnp.float32)
    p = x[:, 1, :].astype(jnp.float32)
    an = a / jnp.maximum(jnp.linalg.norm(a, axis=1, keepdims=True), NORM_EPS)
    pn = p / jnp.maximum(jnp.linalg.norm(p, axis=1, keepdims=True), NORM_EPS)
    N = a.shape[0]
    diff = an[:, None, :] - pn[None, :, :]                    # (N, N, D)
    d2 = jnp.sum((diff + PDIST_EPS) ** 2, axis=-1)            # (N, N)
    masked = jnp.where(jnp.eye(N, dtype=bool), jnp.inf, d2)
    negidx = jnp.argmin(masked, axis=1)
    nneg = pn[negidx]
    pos_d2 = jnp.sum((an - pn + PDIST_EPS) ** 2, axis=1)
    neg_d2 = jnp.sum((an - nneg + PDIST_EPS) ** 2, axis=1)
    nloss = jnp.mean(jnp.maximum(pos_d2 - neg_d2 + margin, 0.0))
    return nloss, negidx, d2


if __name__ == "__main__":
    key = jax.random.PRNGKey(0)
    N, D = 384, 64                      # 6 row blocks of 64 -> even, multi-block grid
    x = jax.random.normal(key, (N, 2, D), dtype=jnp.float32)

    loss, negidx = triplet_loss_pallas(x, margin=0.0)
    loss = jax.block_until_ready(loss)
    negidx = jax.block_until_ready(negidx)

    ref_loss, ref_negidx, ref_d2 = triplet_loss_reference(x, margin=0.0)
    ref_loss = float(jax.block_until_ready(ref_loss))

    # Loss matches the f32 reference up to bf16-gram mining tolerance.
    assert abs(float(loss) - ref_loss) <= 1e-2 + 1e-2 * abs(ref_loss), (float(loss), ref_loss)

    # Mined negatives are valid (never the matching positive, always < N) and
    # (near-)hardest under exact f32 distances (bf16 gram may flip near-ties).
    rows = jnp.arange(N)
    assert bool(jnp.all((negidx >= 0) & (negidx < N))), "negidx out of range"
    assert bool(jnp.all(negidx != rows)), "negidx selected the diagonal"
    masked_ref = jnp.where(jnp.eye(N, dtype=bool), jnp.inf, ref_d2)
    best = jnp.min(masked_ref, axis=1)
    chosen = ref_d2[rows, negidx]
    assert bool(jnp.all(chosen <= best + 1e-2)), float(jnp.max(chosen - best))

    print("KERNEL_OK")
</pallas_src>

<mosaic_0001>
module attributes {stable_mosaic.version = 11 : i64} {
  func.func @triplet_kernel(%arg0: i32, %arg1: memref<64x128xf32, #tpu.memory_space<vmem>>, %arg2: memref<64x128xf32, #tpu.memory_space<vmem>>, %arg3: memref<128x384xbf16, #tpu.memory_space<vmem>>, %arg4: memref<64x1xf32, #tpu.memory_space<vmem>>, %arg5: memref<64x1xi32, #tpu.memory_space<vmem>>) attributes {dimension_semantics = [#tpu.dimension_semantics<parallel>], iteration_bounds = array<i64: 6>, scalar_prefetch = 0 : i64, scratch_operands = 0 : i64, tpu.core_type = #tpu.core_type<tc>, window_params = [{transform_indices = @transform_0, window_bounds = array<i64: 64, 128>}, {transform_indices = @transform_1, window_bounds = array<i64: 64, 128>}, {pipeline_mode = #tpu.pipeline_mode<synchronous>, transform_indices = @transform_2, window_bounds = array<i64: 128, 384>}, {transform_indices = @transform_3, window_bounds = array<i64: 64, 1>}, {transform_indices = @transform_4, window_bounds = array<i64: 64, 1>}]} {
    %c0 = arith.constant 0 : index
    %c0_0 = arith.constant 0 : index
    %0 = vector.load %arg1[%c0, %c0_0] : memref<64x128xf32, #tpu.memory_space<vmem>>, vector<64x128xf32>
    %c0_1 = arith.constant 0 : index
    %c0_2 = arith.constant 0 : index
    %1 = vector.load %arg2[%c0_1, %c0_2] : memref<64x128xf32, #tpu.memory_space<vmem>>, vector<64x128xf32>
    %2 = arith.subf %0, %1 : vector<64x128xf32>
    %3 = arith.mulf %2, %2 : vector<64x128xf32>
    %cst = arith.constant dense<0.000000e+00> : vector<64xf32>
    %4 = vector.multi_reduction <add>, %3, %cst [1] : vector<64x128xf32> to vector<64xf32>
    %5 = vector.shape_cast %4 : vector<64xf32> to vector<64x1xf32>
    %6 = arith.mulf %0, %0 : vector<64x128xf32>
    %cst_3 = arith.constant dense<0.000000e+00> : vector<64xf32>
    %7 = vector.multi_reduction <add>, %6, %cst_3 [1] : vector<64x128xf32> to vector<64xf32>
    %8 = vector.shape_cast %7 : vector<64xf32> to vector<64x1xf32>
    %9 = arith.truncf %0 : vector<64x128xf32> to vector<64x128xbf16>
    %c0_4 = arith.constant 0 : index
    %c0_5 = arith.constant 0 : index
    %10 = vector.load %arg3[%c0_4, %c0_5] : memref<128x384xbf16, #tpu.memory_space<vmem>>, vector<128x384xbf16>
    %cst_6 = arith.constant dense<0.000000e+00> : vector<64x384xf32>
    %11 = tpu.matmul %9, %10, %cst_6 {dimension_numbers = #tpu.dot_dimension_numbers<[1], [0], [0], [1], [0, 0, 1, 1], [], []>} : vector<64x128xbf16>, vector<128x384xbf16>, vector<64x384xf32> -> vector<64x384xf32>
    %c64_i32 = arith.constant 64 : i32
    %12 = arith.muli %arg0, %c64_i32 : i32
    %13 = tpu.iota {dimensions = array<i32: 0>} : vector<64x1xi32>
    %14 = vector.broadcast %12 : i32 to vector<64x1xi32>
    %15 = arith.addi %14, %13 : vector<64x1xi32>
    %16 = tpu.iota {dimensions = array<i32: 1>} : vector<1x384xi32>
    %17 = vector.broadcast %16 : vector<1x384xi32> to vector<64x384xi32>
    %18 = vector.broadcast %15 : vector<64x1xi32> to vector<64x384xi32>
    %19 = arith.cmpi eq, %17, %18 : vector<64x384xi32>
    %cst_7 = arith.constant 0xFF800000 : f32
    %20 = vector.broadcast %cst_7 : f32 to vector<64x384xf32>
    %21 = arith.select %19, %20, %11 : vector<64x384xi1>, vector<64x384xf32>
    %cst_8 = arith.constant dense<0xFF800000> : vector<64xf32>
    %22 = vector.multi_reduction <maximumf>, %21, %cst_8 [1] : vector<64x384xf32> to vector<64xf32>
    %23 = vector.shape_cast %22 : vector<64xf32> to vector<64x1xf32>
    %24 = vector.broadcast %23 : vector<64x1xf32> to vector<64x384xf32>
    %25 = arith.cmpf oge, %21, %24 : vector<64x384xf32>
    %c384_i32 = arith.constant 384 : i32
    %26 = vector.shape_cast %16 : vector<1x384xi32> to vector<1x384xi32>
    %27 = vector.broadcast %26 : vector<1x384xi32> to vector<64x384xi32>
    %28 = vector.broadcast %c384_i32 : i32 to vector<64x384xi32>
    %29 = arith.select %25, %27, %28 : vector<64x384xi1>, vector<64x384xi32>
    %cst_9 = arith.constant dense<2147483647> : vector<64xi32>
    %30 = vector.multi_reduction <minsi>, %29, %cst_9 [1] : vector<64x384xi32> to vector<64xi32>
    %31 = vector.shape_cast %30 : vector<64xi32> to vector<64x1xi32>
    %cst_10 = arith.constant 1.000000e+00 : f32
    %32 = vector.broadcast %cst_10 : f32 to vector<64x1xf32>
    %33 = arith.addf %8, %32 : vector<64x1xf32>
    %cst_11 = arith.constant 2.000000e+00 : f32
    %34 = vector.broadcast %cst_11 : f32 to vector<64x1xf32>
    %35 = arith.mulf %34, %23 : vector<64x1xf32>
    %36 = arith.subf %33, %35 : vector<64x1xf32>
    %cst_12 = arith.constant 0.000000e+00 : f32
    %37 = vector.broadcast %cst_12 : f32 to vector<64x1xf32>
    %38 = arith.maximumf %36, %37 : vector<64x1xf32>
    %39 = arith.subf %5, %38 : vector<64x1xf32>
    %cst_13 = arith.constant 0.000000e+00 : f32
    %40 = vector.broadcast %cst_13 : f32 to vector<64x1xf32>
    %41 = arith.addf %39, %40 : vector<64x1xf32>
    %cst_14 = arith.constant 0.000000e+00 : f32
    %42 = vector.broadcast %cst_14 : f32 to vector<64x1xf32>
    %43 = arith.maximumf %41, %42 : vector<64x1xf32>
    %c0_15 = arith.constant 0 : index
    %c0_16 = arith.constant 0 : index
    %44 = vector.load %arg4[%c0_15, %c0_16] : memref<64x1xf32, #tpu.memory_space<vmem>>, vector<64x1xf32>
    tpu.vector_store %arg4[%c0_15, %c0_16], %43 {strides = array<i32>} : memref<64x1xf32, #tpu.memory_space<vmem>>, vector<64x1xf32>,
    %c0_17 = arith.constant 0 : index
    %c0_18 = arith.constant 0 : index
    %45 = vector.load %arg5[%c0_17, %c0_18] : memref<64x1xi32, #tpu.memory_space<vmem>>, vector<64x1xi32>
    tpu.vector_store %arg5[%c0_17, %c0_18], %31 {strides = array<i32>} : memref<64x1xi32, #tpu.memory_space<vmem>>, vector<64x1xi32>,
    return
  }
  func.func @transform_0(%arg0: i32) -> (i32, i32) {
    %c0_i32 = arith.constant 0 : i32
    %c0_i32_0 = arith.constant 0 : i32
    return %arg0, %c0_i32 : i32, i32
  }
  func.func @transform_1(%arg0: i32) -> (i32, i32) {
    %c0_i32 = arith.constant 0 : i32
    %c0_i32_0 = arith.constant 0 : i32
    return %arg0, %c0_i32 : i32, i32
  }
  func.func @transform_2(%arg0: i32) -> (i32, i32) {
    %c0_i32 = arith.constant 0 : i32
    %c0_i32_0 = arith.constant 0 : i32
    %c0_i32_1 = arith.constant 0 : i32
    return %c0_i32, %c0_i32_0 : i32, i32
  }
  func.func @transform_3(%arg0: i32) -> (i32, i32) {
    %c0_i32 = arith.constant 0 : i32
    %c0_i32_0 = arith.constant 0 : i32
    return %arg0, %c0_i32 : i32, i32
  }
  func.func @transform_4(%arg0: i32) -> (i32, i32) {
    %c0_i32 = arith.constant 0 : i32
    %c0_i32_0 = arith.constant 0 : i32
    return %arg0, %c0_i32 : i32, i32
  }
}

</mosaic_0001>

<llo_original>
// kernel: triplet_loss_pallas.1
$region0: #{triplet_loss_pallas.1}
  #allocation0 [shape = 'u32[]', space=smem, size = 0x4, offset = 0x4, fixed_abs, tag = 'smem constant byte address 0x4 - core index']
  #allocation1 [shape = 'u32[144,128]{1,0:T(1,128)}', space=vmem, size = 0x12000, scoped, tag = 'internal scratch']
  %s0 = inlined_call_operand.vmem [shape: f32[384,128], index: 0, kind: input, shape index: {}]
  %s1 = inlined_call_operand.vmem [shape: f32[384,128], index: 1, kind: input, shape index: {}]
  %s2 = inlined_call_operand.vmem [shape: bf16[128,384], index: 2, kind: input, shape index: {}]
  %s3 = inlined_call_operand.vmem [shape: f32[384,1], index: 3, kind: output, shape index: {0}]
  %s4 = inlined_call_operand.vmem [shape: s32[384,1], index: 4, kind: output, shape index: {1}]
  %5 = xla_tuple %s3, %s4
  %s6 = sld [smem:[#allocation0]]
  $region53: #{triplet_loss_pallas.1} parent=0
    _
  %s8 = ssub.s32 1, %s6
  %s9 = scalar_select 0, %s8, %s6
  loop: start=0, step=1, limit=8
  $region2: #{triplet_loss_pallas.1} parent=0 // loop_pre_header
    _
  $region3: #{triplet_loss_pallas.1} parent=0 // loop_header
    %s11 = sphi 0, %s15
    %p12 = scmp.ge.s32.totalorder %s11, 8
    %s21 = sphi 0, %s23
    %s24 = sphi 0, %s21
    %s25 = sphi 0, %s24
    %s41 = sphi 0, %s25
    %s47 = sphi 0, %s49
    %s50 = sphi 0, %s47
    %s51 = sphi 0, %s50
    %s67 = sphi 0, %s51
    %s71 = sphi 0, %s71
    %s73 = sphi 0, %s71
    %s74 = sphi 0, %s73
    %s88 = sphi 0, %s74
    %s94 = sphi 0, %s96
    %s97 = sphi 0, %s94
    %s98 = sphi 0, %s97
    %s114 = sphi 0, %s98
    %s120 = sphi 0, %s122
    %s123 = sphi 0, %s120
    %s124 = sphi 0, %s123
    %s140 = sphi 0, %s124
  $region4: #{triplet_loss_pallas.1} parent=0 // loop_header_branch
    %14 = sbr.rel (%p12) target = $region8
  $region5: #{triplet_loss_pallas.1} parent=0 // loop_body
    %s16 = ssub.s32 %s11, 1
    %s17 = ssub.s32 %s11, 2
    %s18 = sadd.s32 %s11, 1
    %s19 = ssub.s32 %s11, %s18
    %p20 = scmp.eq.s32.totalorder %s19, 0
    %s22 = sadd.s32 %s21, 1
    %s23 = scalar_select %p20, %s21, %s22
    %p26 = pneg %p20
    %p27 = scmp.eq.s32.totalorder %s11, 5
    %p28 = por %p26, %p27
    %p29 = scmp.ne.s32.totalorder %s21, %s24
    %p30 = scmp.eq.s32.totalorder %s11, 0
    %p31 = por %p29, %p30
    %p32 = scmp.ne.s32.totalorder %s21, %s24
    %p33 = scmp.eq.s32.totalorder %s16, 5
    %p34 = por %p32, %p33
    %p35 = scmp.ne.s32.totalorder %s24, %s25
    %p36 = scmp.eq.s32.totalorder %s16, 0
    %p37 = por %p35, %p36
    %p38 = scmp.ne.s32.totalorder %s24, %s25
    %p39 = scmp.eq.s32.totalorder %s17, 5
    %p40 = por %p38, %p39
    %p42 = scmp.ne.s32.totalorder %s25, %s41
    %p43 = scmp.eq.s32.totalorder %s17, 0
    %p44 = por %p42, %p43
    %s45 = ssub.s32 %s11, %s18
    %p46 = scmp.eq.s32.totalorder %s45, 0
    %s48 = sadd.s32 %s47, 1
    %s49 = scalar_select %p46, %s47, %s48
    %p52 = pneg %p46
    %p53 = scmp.eq.s32.totalorder %s11, 5
    %p54 = por %p52, %p53
    %p55 = scmp.ne.s32.totalorder %s47, %s50
    %p56 = scmp.eq.s32.totalorder %s11, 0
    %p57 = por %p55, %p56
    %p58 = scmp.ne.s32.totalorder %s47, %s50
    %p59 = scmp.eq.s32.totalorder %s16, 5
    %p60 = por %p58, %p59
    %p61 = scmp.ne.s32.totalorder %s50, %s51
    %p62 = scmp.eq.s32.totalorder %s16, 0
    %p63 = por %p61, %p62
    %p64 = scmp.ne.s32.totalorder %s50, %s51
    %p65 = scmp.eq.s32.totalorder %s17, 5
    %p66 = por %p64, %p65
    %p68 = scmp.ne.s32.totalorder %s51, %s67
    %p69 = scmp.eq.s32.totalorder %s17, 0
    %p70 = por %p68, %p69
    %s72 = sadd.s32 %s71, 1
    %p75 = scmp.eq.s32.totalorder %s11, 5
    %p76 = scmp.ne.s32.totalorder %s71, %s73
    %p77 = scmp.eq.s32.totalorder %s11, 0
    %p78 = por %p76, %p77
    %p79 = scmp.ne.s32.totalorder %s71, %s73
    %p80 = scmp.eq.s32.totalorder %s16, 5
    %p81 = por %p79, %p80
    %p82 = scmp.ne.s32.totalorder %s73, %s74
    %p83 = scmp.eq.s32.totalorder %s16, 0
    %p84 = por %p82, %p83
    %p85 = scmp.ne.s32.totalorder %s73, %s74
    %p86 = scmp.eq.s32.totalorder %s17, 5
    %p87 = por %p85, %p86
    %p89 = scmp.ne.s32.totalorder %s74, %s88
    %p90 = scmp.eq.s32.totalorder %s17, 0
    %p91 = por %p89, %p90
    %s92 = ssub.s32 %s11, %s18
    %p93 = scmp.eq.s32.totalorder %s92, 0
    %s95 = sadd.s32 %s94, 1
    %s96 = scalar_select %p93, %s94, %s95
    %p99 = pneg %p93
    %p100 = scmp.eq.s32.totalorder %s11, 5
    %p101 = por %p99, %p100
    %p102 = scmp.ne.s32.totalorder %s94, %s97
    %p103 = scmp.eq.s32.totalorder %s11, 0
    %p104 = por %p102, %p103
    %p105 = scmp.ne.s32.totalorder %s94, %s97
    %p106 = scmp.eq.s32.totalorder %s16, 5
    %p107 = por %p105, %p106
    %p108 = scmp.ne.s32.totalorder %s97, %s98
    %p109 = scmp.eq.s32.totalorder %s16, 0
    %p110 = por %p108, %p109
    %p111 = scmp.ne.s32.totalorder %s97, %s98
    %p112 = scmp.eq.s32.totalorder %s17, 5
    %p113 = por %p111, %p112
    %p115 = scmp.ne.s32.totalorder %s98, %s114
    %p116 = scmp.eq.s32.totalorder %s17, 0
    %p117 = por %p115, %p116
    %s118 = ssub.s32 %s11, %s18
    %p119 = scmp.eq.s32.totalorder %s118, 0
    %s121 = sadd.s32 %s120, 1
    %s122 = scalar_select %p119, %s120, %s121
    %p125 = pneg %p119
    %p126 = scmp.eq.s32.totalorder %s11, 5
    %p127 = por %p125, %p126
    %p128 = scmp.ne.s32.totalorder %s120, %s123
    %p129 = scmp.eq.s32.totalorder %s11, 0
    %p130 = por %p128, %p129
    %p131 = scmp.ne.s32.totalorder %s120, %s123
    %p132 = scmp.eq.s32.totalorder %s16, 5
    %p133 = por %p131, %p132
    %p134 = scmp.ne.s32.totalorder %s123, %s124
    %p135 = scmp.eq.s32.totalorder %s16, 0
    %p136 = por %p134, %p135
    %p137 = scmp.ne.s32.totalorder %s123, %s124
    %p138 = scmp.eq.s32.totalorder %s17, 5
    %p139 = por %p137, %p138
    %p141 = scmp.ne.s32.totalorder %s124, %s140
    %p142 = scmp.eq.s32.totalorder %s17, 0
    %p143 = por %p141, %p142
    %p144 = scmp.le.s32.totalorder 1, %s11
    %p145 = scmp.lt.s32.totalorder %s11, 7
    %p146 = pnand %p144, %p145
    %p147 = pneg %p146
    // Predicated region
    $region9: #{triplet_loss_pallas.1} parent=5 // pred_check
      _
    $region10: #{triplet_loss_pallas.1} parent=5 // pred_check_branch
      %149 = sbr.rel (%p146) target = $region12
    $region11: #{triplet_loss_pallas.1} parent=5 // pred_region
      %s150 = ssub.s32 %s11, 1
      // Predicated region
      $region13: #{triplet_loss_pallas.1} parent=11 // pred_check
        %p151 = pneg %p84
      $region14: #{triplet_loss_pallas.1} parent=11 // pred_check_branch
        %153 = sbr.rel (%p151) target = $region16
      $region15: #{triplet_loss_pallas.1} parent=11 // pred_region
        _
      $region16: #{triplet_loss_pallas.1} parent=11 // pred_fallthru
        _
    $region12: #{triplet_loss_pallas.1} parent=5 // pred_fallthru
      _
    %p154 = scmp.lt.s32.totalorder %s11, 6
    // Predicated region
    $region17: #{triplet_loss_pallas.1} parent=5 // pred_check
      %p155 = pneg %p154
    $region18: #{triplet_loss_pallas.1} parent=5 // pred_check_branch
      %157 = sbr.rel (%p155) target = $region20
    $region19: #{triplet_loss_pallas.1} parent=5 // pred_region
      // Predicated region
      $region21: #{triplet_loss_pallas.1} parent=19 // pred_check
        %p158 = pneg %p31
      $region22: #{triplet_loss_pallas.1} parent=19 // pred_check_branch
        %160 = sbr.rel (%p158) target = $region24
      $region23: #{triplet_loss_pallas.1} parent=19 // pred_region
        %s161 = smul.u32 8, %s11
        %p162 = scmp.lt.s32.totalorder %s161, 47
        %s163 = scalar_select %p162, %s161, 47
        %s164 = smul.addr %s163, 8
        %s165 = scalar_lea.vmem %s0, %s164
        %s166 = smul.u32 8, %s11
      $region24: #{triplet_loss_pallas.1} parent=19 // pred_fallthru
        _
      // Predicated region
      $region25: #{triplet_loss_pallas.1} parent=19 // pred_check
        %p167 = pneg %p57
      $region26: #{triplet_loss_pallas.1} parent=19 // pred_check_branch
        %169 = sbr.rel (%p167) target = $region28
      $region27: #{triplet_loss_pallas.1} parent=19 // pred_region
        %s170 = smul.u32 8, %s11
        %p171 = scmp.lt.s32.totalorder %s170, 47
        %s172 = scalar_select %p171, %s170, 47
        %s173 = smul.addr %s172, 8
        %s174 = scalar_lea.vmem %s1, %s173
        %s175 = smul.u32 8, %s11
      $region28: #{triplet_loss_pallas.1} parent=19 // pred_fallthru
        _
    $region20: #{triplet_loss_pallas.1} parent=5 // pred_fallthru
      _
    %p176 = scmp.le.s32.totalorder 1, %s11
    %p177 = scmp.lt.s32.totalorder %s11, 7
    %p178 = pnand %p176, %p177
    %p179 = pneg %p178
    // Predicated region
    $region29: #{triplet_loss_pallas.1} parent=5 // pred_check
      _
    $region30: #{triplet_loss_pallas.1} parent=5 // pred_check_branch
      %181 = sbr.rel (%p178) target = $region32
    $region31: #{triplet_loss_pallas.1} parent=5 // pred_region
      %s182 = ssub.s32 %s11, 1
      %s183 = smul.u32 8, %s16
      %p184 = scmp.lt.s32.totalorder %s183, 47
      %s185 = scalar_select %p184, %s183, 47
      %s186 = smul.addr %s185, 8
      %s187 = scalar_lea.vmem %s0, %s186
      %p188 = pneg %p37
      %p189 = pneg %p34
      %s190 = smul.u32 8, %s16
      %p191 = scmp.lt.s32.totalorder %s190, 47
      %s192 = scalar_select %p191, %s190, 47
      %s193 = smul.addr %s192, 8
      %s194 = scalar_lea.vmem %s1, %s193
      %p195 = pneg %p63
      %p196 = pneg %p60
      %p197 = pneg %p84
      %p198 = pneg %p81
      %p199 = pneg %p110
      %p200 = pneg %p107
      %s201 = smul.u32 8, %s16
      %p202 = scmp.lt.s32.totalorder %s201, 47
      %s203 = scalar_select %p202, %s201, 47
      %s204 = smul.addr %s203, 8
      %s205 = scalar_lea.vmem %s3, %s204
      %p206 = pneg %p136
      %p207 = pneg %p133
      %s208 = smul.u32 8, %s16
      %p209 = scmp.lt.s32.totalorder %s208, 47
      %s210 = scalar_select %p209, %s208, 47
      %s211 = smul.addr %s210, 8
      %s212 = scalar_lea.vmem %s4, %s211
      %s213 = smul.u32 8, %s16
      %p214 = scmp.lt.s32.totalorder %s213, 47
      %s215 = scalar_select %p214, %s213, 47
      %s216 = smul.addr %s215, 8
      %s217 = scalar_lea.vmem %s0, %s216
      %s218 = smul.u32 8, %s16
      %s219 = smul.u32 8, %s16
      %p220 = scmp.lt.s32.totalorder %s219, 47
      %s221 = scalar_select %p220, %s219, 47
      %s222 = smul.addr %s221, 8
      %s223 = scalar_lea.vmem %s1, %s222
      %s224 = smul.u32 8, %s16
      %s225 = smul.u32 8, %s16
      %p226 = scmp.lt.s32.totalorder %s225, 47
      %s227 = scalar_select %p226, %s225, 47
      %s228 = smul.addr %s227, 8
      %s229 = scalar_lea.vmem %s3, %s228
      %s230 = smul.u32 8, %s16
      %s231 = smul.u32 8, %s16
      %p232 = scmp.lt.s32.totalorder %s231, 47
      %s233 = scalar_select %p232, %s231, 47
      %s234 = smul.addr %s233, 8
      %s235 = scalar_lea.vmem %s4, %s234
      %s236 = smul.u32 8, %s16
      %v238 = vld [vmem:[%s217] sm:$0xff]
      %v239 = vld [vmem:[%s217 + $0x8] sm:$0xff]
      %v240 = vld [vmem:[%s217 + $0x10] sm:$0xff]
      %v241 = vld [vmem:[%s217 + $0x18] sm:$0xff]
      %v242 = vld [vmem:[%s217 + $0x20] sm:$0xff]
      %v243 = vld [vmem:[%s217 + $0x28] sm:$0xff]
      %v244 = vld [vmem:[%s217 + $0x30] sm:$0xff]
      %v245 = vld [vmem:[%s217 + $0x38] sm:$0xff]
      %v246 = vld [vmem:[%s223] sm:$0xff]
      %v247 = vld [vmem:[%s223 + $0x8] sm:$0xff]
      %v248 = vld [vmem:[%s223 + $0x10] sm:$0xff]
      %v249 = vld [vmem:[%s223 + $0x18] sm:$0xff]
      %v250 = vld [vmem:[%s223 + $0x20] sm:$0xff]
      %v251 = vld [vmem:[%s223 + $0x28] sm:$0xff]
      %v252 = vld [vmem:[%s223 + $0x30] sm:$0xff]
      %v253 = vld [vmem:[%s223 + $0x38] sm:$0xff]
      %v254 = vsub.f32 %v238, %v246
      %v255 = vsub.f32 %v239, %v247
      %v256 = vsub.f32 %v240, %v248
      %v257 = vsub.f32 %v241, %v249
      %v258 = vsub.f32 %v242, %v250
      %v259 = vsub.f32 %v243, %v251
      %v260 = vsub.f32 %v244, %v252
      %v261 = vsub.f32 %v245, %v253
      %v262 = vmul.f32 %v254, %v254
      %v263 = vmul.f32 %v255, %v255
      %v264 = vmul.f32 %v256, %v256
      %v265 = vmul.f32 %v257, %v257
      %v266 = vmul.f32 %v258, %v258
      %v267 = vmul.f32 %v259, %v259
      %v268 = vmul.f32 %v260, %v260
      %v269 = vmul.f32 %v261, %v261
      %270 = vadd.xlane.f32.xlu0 %v262
      %v271 = vpop.xlane.xlu0 %270
      %272 = vadd.xlane.f32.xlu0 %v263
      %v273 = vpop.xlane.xlu0 %272
      %274 = vadd.xlane.f32.xlu0 %v264
      %v275 = vpop.xlane.xlu0 %274
      %276 = vadd.xlane.f32.xlu0 %v265
      %v277 = vpop.xlane.xlu0 %276
      %278 = vadd.xlane.f32.xlu0 %v266
      %v279 = vpop.xlane.xlu0 %278
      %280 = vadd.xlane.f32.xlu0 %v267
      %v281 = vpop.xlane.xlu0 %280
      %282 = vadd.xlane.f32.xlu0 %v268
      %v283 = vpop.xlane.xlu0 %282
      %284 = vadd.xlane.f32.xlu0 %v269
      %v285 = vpop.xlane.xlu0 %284
      %v286 = vmul.f32 %v238, %v238
      %v287 = vmul.f32 %v239, %v239
      %v288 = vmul.f32 %v240, %v240
      %v289 = vmul.f32 %v241, %v241
      %v290 = vmul.f32 %v242, %v242
      %v291 = vmul.f32 %v243, %v243
      %v292 = vmul.f32 %v244, %v244
      %v293 = vmul.f32 %v245, %v245
      %294 = vadd.xlane.f32.xlu0 %v286
      %v295 = vpop.xlane.xlu0 %294
      %296 = vadd.xlane.f32.xlu0 %v287
      %v297 = vpop.xlane.xlu0 %296
      %298 = vadd.xlane.f32.xlu0 %v288
      %v299 = vpop.xlane.xlu0 %298
      %300 = vadd.xlane.f32.xlu0 %v289
      %v301 = vpop.xlane.xlu0 %300
      %302 = vadd.xlane.f32.xlu0 %v290
      %v303 = vpop.xlane.xlu0 %302
      %304 = vadd.xlane.f32.xlu0 %v291
      %v305 = vpop.xlane.xlu0 %304
      %306 = vadd.xlane.f32.xlu0 %v292
      %v307 = vpop.xlane.xlu0 %306
      %308 = vadd.xlane.f32.xlu0 %v293
      %v309 = vpop.xlane.xlu0 %308
      %v310 = vpack.c.bf16 %v239, %v238
      %v311 = vpack.c.bf16 %v241, %v240
      %v312 = vpack.c.bf16 %v243, %v242
      %v313 = vpack.c.bf16 %v245, %v244
      %v314 = vld [vmem:[%s2] sm:$0xff]
      %v315 = vld [vmem:[%s2 + $0x8] sm:$0xf]
      %v316 = vld [vmem:[%s2 + $0xc] sm:$0xff]
      %v317 = vld [vmem:[%s2 + $0x14] sm:$0xf]
      %v318 = vld [vmem:[%s2 + $0x18] sm:$0xff]
      %v319 = vld [vmem:[%s2 + $0x20] sm:$0xf]
      %v320 = vld [vmem:[%s2 + $0x24] sm:$0xff]
      %v321 = vld [vmem:[%s2 + $0x2c] sm:$0xf]
      %v322 = vld [vmem:[%s2 + $0x30] sm:$0xff]
      %v323 = vld [vmem:[%s2 + $0x38] sm:$0xf]
      %v324 = vld [vmem:[%s2 + $0x3c] sm:$0xff]
      %v325 = vld [vmem:[%s2 + $0x44] sm:$0xf]
      %v326 = vld [vmem:[%s2 + $0x48] sm:$0xff]
      %v327 = vld [vmem:[%s2 + $0x50] sm:$0xf]
      %v328 = vld [vmem:[%s2 + $0x54] sm:$0xff]
      %v329 = vld [vmem:[%s2 + $0x5c] sm:$0xf]
      %v330 = vld [vmem:[%s2 + $0x60] sm:$0xff]
      %v331 = vld [vmem:[%s2 + $0x68] sm:$0xf]
      %v332 = vld [vmem:[%s2 + $0x6c] sm:$0xff]
      %v333 = vld [vmem:[%s2 + $0x74] sm:$0xf]
      %v334 = vld [vmem:[%s2 + $0x78] sm:$0xff]
      %v335 = vld [vmem:[%s2 + $0x80] sm:$0xf]
      %v336 = vld [vmem:[%s2 + $0x84] sm:$0xff]
      %v337 = vld [vmem:[%s2 + $0x8c] sm:$0xf]
      %v338 = vld [vmem:[%s2 + $0x90] sm:$0xff]
      %v339 = vld [vmem:[%s2 + $0x98] sm:$0xf]
      %v340 = vld [vmem:[%s2 + $0x9c] sm:$0xff]
      %v341 = vld [vmem:[%s2 + $0xa4] sm:$0xf]
      %v342 = vld [vmem:[%s2 + $0xa8] sm:$0xff]
      %v343 = vld [vmem:[%s2 + $0xb0] sm:$0xf]
      %v344 = vld [vmem:[%s2 + $0xb4] sm:$0xff]
      %v345 = vld [vmem:[%s2 + $0xbc] sm:$0xf]
      %v378 = vunpack.c.l.b16 %v314
      %v379 = vunpack.c.h.b16 %v314
      %v380 = vunpack.c.l.b16 %v315
      %v381 = vunpack.c.l.b16 %v316
      %v382 = vunpack.c.h.b16 %v316
      %v383 = vunpack.c.l.b16 %v317
      %v384 = vunpack.c.l.b16 %v318
      %v385 = vunpack.c.h.b16 %v318
      %v386 = vunpack.c.l.b16 %v319
      %v387 = vunpack.c.l.b16 %v320
      %v388 = vunpack.c.h.b16 %v320
      %v389 = vunpack.c.l.b16 %v321
      %v390 = vunpack.c.l.b16 %v322
      %v391 = vunpack.c.h.b16 %v322
      %v392 = vunpack.c.l.b16 %v323
      %v393 = vunpack.c.l.b16 %v324
      %v394 = vunpack.c.h.b16 %v324
      %v395 = vunpack.c.l.b16 %v325
      %v396 = vunpack.c.l.b16 %v326
      %v397 = vunpack.c.h.b16 %v326
      %v398 = vunpack.c.l.b16 %v327
      %v399 = vunpack.c.l.b16 %v328
      %v400 = vunpack.c.h.b16 %v328
      %v401 = vunpack.c.l.b16 %v329
      %v402 = vunpack.c.l.b16 %v330
      %v403 = vunpack.c.h.b16 %v330
      %v404 = vunpack.c.l.b16 %v331
      %v405 = vunpack.c.l.b16 %v332
      %v406 = vunpack.c.h.b16 %v332
      %v407 = vunpack.c.l.b16 %v333
      %v408 = vunpack.c.l.b16 %v334
      %v409 = vunpack.c.h.b16 %v334
      %v410 = vunpack.c.l.b16 %v335
      %v411 = vunpack.c.l.b16 %v336
      %v412 = vunpack.c.h.b16 %v336
      %v413 = vunpack.c.l.b16 %v337
      %v414 = vunpack.c.l.b16 %v338
      %v415 = vunpack.c.h.b16 %v338
      %v416 = vunpack.c.l.b16 %v339
      %v417 = vunpack.c.l.b16 %v340
      %v418 = vunpack.c.h.b16 %v340
      %v419 = vunpack.c.l.b16 %v341
      %v420 = vunpack.c.l.b16 %v342
      %v421 = vunpack.c.h.b16 %v342
      %v422 = vunpack.c.l.b16 %v343
      %v423 = vunpack.c.l.b16 %v344
      %v424 = vunpack.c.h.b16 %v344
      %v425 = vunpack.c.l.b16 %v345
      %v426 = vpack.c.b16 %v381, %v378
      %v427 = vpack.c.b16 %v382, %v379
      %v428 = vpack.c.b16 %v383, %v380
      %v429 = vpack.c.b16 %v387, %v384
      %v430 = vpack.c.b16 %v388, %v385
      %v431 = vpack.c.b16 %v389, %v386
      %v432 = vpack.c.b16 %v393, %v390
      %v433 = vpack.c.b16 %v394, %v391
      %v434 = vpack.c.b16 %v395, %v392
      %v435 = vpack.c.b16 %v399, %v396
      %v436 = vpack.c.b16 %v400, %v397
      %v437 = vpack.c.b16 %v401, %v398
      %v438 = vpack.c.b16 %v405, %v402
      %v439 = vpack.c.b16 %v406, %v403
      %v440 = vpack.c.b16 %v407, %v404
      %v441 = vpack.c.b16 %v411, %v408
      %v442 = vpack.c.b16 %v412, %v409
      %v443 = vpack.c.b16 %v413, %v410
      %v444 = vpack.c.b16 %v417, %v414
      %v445 = vpack.c.b16 %v418, %v415
      %v446 = vpack.c.b16 %v419, %v416
      %v447 = vpack.c.b16 %v423, %v420
      %v448 = vpack.c.b16 %v424, %v421
      %v449 = vpack.c.b16 %v425, %v422
      %474 = vmatprep.subr.bf16.mxu0 %v448
      %475 = vmatpush1.bf16.msra.mxu0 %v447
      %476 = vmatprep.subr.bf16.mxu0 %v445
      %477 = vmatpush1.bf16.msra.mxu0 %v444
      %478 = vmatprep.subr.bf16.mxu0 %v442
      %479 = vmatpush1.bf16.msra.mxu0 %v441
      %480 = vmatprep.subr.bf16.mxu0 %v439
      %481 = vmatpush1.bf16.msra.mxu0 %v438
      %482 = vmatprep.subr.bf16.mxu0 %v436
      %483 = vmatpush1.bf16.msra.mxu0 %v435
      %484 = vmatprep.subr.bf16.mxu0 %v433
      %485 = vmatpush1.bf16.msra.mxu0 %v432
      %486 = vmatprep.subr.bf16.mxu0 %v430
      %487 = vmatpush1.bf16.msra.mxu0 %v429
      %488 = vmatprep.subr.bf16.mxu0 %v427
      %489 = vmatpush1.bf16.msra.mxu0 %v426
      %490 = vmatprep.subr.bf16.mxu0 0
      %491 = vmatpush2.bf16.msra.mxu0 0
      %492 = vmatprep.subr.bf16.mxu0 0
      %493 = vmatpush2.bf16.msra.mxu0 0
      %494 = vmatprep.subr.bf16.mxu0 0
      %495 = vmatpush2.bf16.msra.mxu0 0
      %496 = vmatprep.subr.bf16.mxu0 0
      %497 = vmatpush2.bf16.msra.mxu0 0
      %498 = vmatprep.subr.bf16.mxu0 0
      %499 = vmatpush2.bf16.msra.mxu0 0
      %500 = vmatprep.subr.bf16.mxu0 0
      %501 = vmatpush2.bf16.msra.mxu0 0
      %502 = vmatprep.subr.bf16.mxu0 0
      %503 = vmatpush2.bf16.msra.mxu0 0
      %504 = vmatprep.subr.bf16.mxu0 0
      %505 = vmatpush2.bf16.msra.mxu0 0
      %506 = vmatprep.mubr.bf16.mxu0 0
      %507 = vmatmul.mubr.bf16.gmra.mxu0 %v310
      %v508 = vpop.f32.mrf.mxu0
      %v509 = vadd.f32 0.0, %v508
      %v510 = vpop.f32.mrf.mxu0
      %v511 = vadd.f32 0.0, %v510
      %v512 = vpop.f32.mrf.mxu0
      %v513 = vadd.f32 0.0, %v512
      %v514 = vpop.f32.mrf.mxu0
      %v515 = vadd.f32 0.0, %v514
      %516 = vmatprep.mubr.bf16.mxu0 0
      %517 = vmatmul.mubr.bf16.gmra.mxu0 %v311
      %v518 = vpop.f32.mrf.mxu0
      %v519 = vadd.f32 0.0, %v518
      %v520 = vpop.f32.mrf.mxu0
      %v521 = vadd.f32 0.0, %v520
      %v522 = vpop.f32.mrf.mxu0
      %v523 = vadd.f32 0.0, %v522
      %v524 = vpop.f32.mrf.mxu0
      %v525 = vadd.f32 0.0, %v524
      %526 = vmatprep.mubr.bf16.mxu0 0
      %527 = vmatmul.mubr.bf16.gmra.mxu0 %v312
      %v528 = vpop.f32.mrf.mxu0
      %v529 = vadd.f32 0.0, %v528
      %v530 = vpop.f32.mrf.mxu0
      %v531 = vadd.f32 0.0, %v530
      %v532 = vpop.f32.mrf.mxu0
      %v533 = vadd.f32 0.0, %v532
      %v534 = vpop.f32.mrf.mxu0
      %v535 = vadd.f32 0.0, %v534
      %536 = vmatprep.mubr.bf16.mxu0 0
      %537 = vmatmul.mubr.bf16.gmra.mxu0 %v313
      %v538 = vpop.f32.mrf.mxu0
      %v539 = vadd.f32 0.0, %v538
      %v540 = vpop.f32.mrf.mxu0
      %v541 = vadd.f32 0.0, %v540
      %v542 = vpop.f32.mrf.mxu0
      %v543 = vadd.f32 0.0, %v542
      %v544 = vpop.f32.mrf.mxu0
      %v545 = vadd.f32 0.0, %v544
      %546 = vdwg.mxu0
      %547 = vmatprep.subr.bf16.mxu0 0
      %548 = vmatpush1.bf16.msra.mxu0 %v449
      %549 = vmatprep.subr.bf16.mxu0 0
      %550 = vmatpush1.bf16.msra.mxu0 %v446
      %551 = vmatprep.subr.bf16.mxu0 0
      %552 = vmatpush1.bf16.msra.mxu0 %v443
      %553 = vmatprep.subr.bf16.mxu0 0
      %554 = vmatpush1.bf16.msra.mxu0 %v440
      %555 = vmatprep.subr.bf16.mxu0 0
      %556 = vmatpush1.bf16.msra.mxu0 %v437
      %557 = vmatprep.subr.bf16.mxu0 0
      %558 = vmatpush1.bf16.msra.mxu0 %v434
      %559 = vmatprep.subr.bf16.mxu0 0
      %560 = vmatpush1.bf16.msra.mxu0 %v431
      %561 = vmatprep.subr.bf16.mxu0 0
      %562 = vmatpush1.bf16.msra.mxu0 %v428
      %563 = vmatprep.subr.bf16.mxu0 0
      %564 = vmatpush2.bf16.msra.mxu0 0
      %565 = vmatprep.subr.bf16.mxu0 0
      %566 = vmatpush2.bf16.msra.mxu0 0
      %567 = vmatprep.subr.bf16.mxu0 0
      %568 = vmatpush2.bf16.msra.mxu0 0
      %569 = vmatprep.subr.bf16.mxu0 0
      %570 = vmatpush2.bf16.msra.mxu0 0
      %571 = vmatprep.subr.bf16.mxu0 0
      %572 = vmatpush2.bf16.msra.mxu0 0
      %573 = vmatprep.subr.bf16.mxu0 0
      %574 = vmatpush2.bf16.msra.mxu0 0
      %575 = vmatprep.subr.bf16.mxu0 0
      %576 = vmatpush2.bf16.msra.mxu0 0
      %577 = vmatprep.subr.bf16.mxu0 0
      %578 = vmatpush2.bf16.msra.mxu0 0
      %579 = vmatprep.mubr.bf16.mxu0 0
      %580 = vmatmul.mubr.bf16.gmra.mxu0 %v310
      %v581 = vpop.f32.mrf.mxu0
      %v582 = vadd.f32 0.0, %v581
      %v583 = vpop.f32.mrf.mxu0
      %v584 = vpop.f32.mrf.mxu0
      %v585 = vadd.f32 0.0, %v584
      %v586 = vpop.f32.mrf.mxu0
      %587 = vmatprep.mubr.bf16.mxu0 0
      %588 = vmatmul.mubr.bf16.gmra.mxu0 %v311
      %v589 = vpop.f32.mrf.mxu0
      %v590 = vadd.f32 0.0, %v589
      %v591 = vpop.f32.mrf.mxu0
      %v592 = vpop.f32.mrf.mxu0
      %v593 = vadd.f32 0.0, %v592
      %v594 = vpop.f32.mrf.mxu0
      %595 = vmatprep.mubr.bf16.mxu0 0
      %596 = vmatmul.mubr.bf16.gmra.mxu0 %v312
      %v597 = vpop.f32.mrf.mxu0
      %v598 = vadd.f32 0.0, %v597
      %v599 = vpop.f32.mrf.mxu0
      %v600 = vpop.f32.mrf.mxu0
      %v601 = vadd.f32 0.0, %v600
      %v602 = vpop.f32.mrf.mxu0
      %603 = vmatprep.mubr.bf16.mxu0 0
      %604 = vmatmul.mubr.bf16.gmra.mxu0 %v313
      %v605 = vpop.f32.mrf.mxu0
      %v606 = vadd.f32 0.0, %v605
      %v607 = vpop.f32.mrf.mxu0
      %v608 = vpop.f32.mrf.mxu0
      %v609 = vadd.f32 0.0, %v608
      %v610 = vpop.f32.mrf.mxu0
      %611 = vdwg.mxu0
      %s612 = smul.u32 %s16, 64
      %v613 = vlaneseq
      %v614 = vshrl.u32 %v613, 7
      %v615 = vadd.s32 %v614, 8
      %v616 = vadd.s32 %v614, 16
      %v617 = vadd.s32 %v614, 24
      %v618 = vadd.s32 %v614, 32
      %v619 = vadd.s32 %v614, 40
      %v620 = vadd.s32 %v614, 48
      %v621 = vadd.s32 %v614, 56
      %v622 = vstv %s612
      %v623 = vadd.s32 %v622, %v614
      %v624 = vadd.s32 %v622, %v615
      %v625 = vadd.s32 %v622, %v616
      %v626 = vadd.s32 %v622, %v617
      %v627 = vadd.s32 %v622, %v618
      %v628 = vadd.s32 %v622, %v619
      %v629 = vadd.s32 %v622, %v620
      %v630 = vadd.s32 %v622, %v621
      %v631 = vlaneseq
      %v632 = vand.u32 %v631, 127
      %v633 = vadd.s32 %v632, 128
      %v634 = vadd.s32 %v632, 256
      %vm635 = vcmp.eq.s32.totalorder %v632, %v623
      %vm636 = vcmp.eq.s32.totalorder %v633, %v623
      %vm637 = vcmp.eq.s32.totalorder %v634, %v623
      %vm638 = vcmp.eq.s32.totalorder %v632, %v624
      %vm639 = vcmp.eq.s32.totalorder %v633, %v624
      %vm640 = vcmp.eq.s32.totalorder %v634, %v624
      %vm641 = vcmp.eq.s32.totalorder %v632, %v625
      %vm642 = vcmp.eq.s32.totalorder %v633, %v625
      %vm643 = vcmp.eq.s32.totalorder %v634, %v625
      %vm644 = vcmp.eq.s32.totalorder %v632, %v626
      %vm645 = vcmp.eq.s32.totalorder %v633, %v626
      %vm646 = vcmp.eq.s32.totalorder %v634, %v626
      %vm647 = vcmp.eq.s32.totalorder %v632, %v627
      %vm648 = vcmp.eq.s32.totalorder %v633, %v627
      %vm649 = vcmp.eq.s32.totalorder %v634, %v627
      %vm650 = vcmp.eq.s32.totalorder %v632, %v628
      %vm651 = vcmp.eq.s32.totalorder %v633, %v628
      %vm652 = vcmp.eq.s32.totalorder %v634, %v628
      %vm653 = vcmp.eq.s32.totalorder %v632, %v629
      %vm654 = vcmp.eq.s32.totalorder %v633, %v629
      %vm655 = vcmp.eq.s32.totalorder %v634, %v629
      %vm656 = vcmp.eq.s32.totalorder %v632, %v630
      %vm657 = vcmp.eq.s32.totalorder %v633, %v630
      %vm658 = vcmp.eq.s32.totalorder %v634, %v630
      %v659 = vsel %vm635, -inf, %v509
      %v660 = vsel %vm636, -inf, %v511
      %v661 = vsel %vm637, -inf, %v582
      %v662 = vsel %vm638, -inf, %v513
      %v663 = vsel %vm639, -inf, %v515
      %v664 = vsel %vm640, -inf, %v585
      %v665 = vsel %vm641, -inf, %v519
      %v666 = vsel %vm642, -inf, %v521
      %v667 = vsel %vm643, -inf, %v590
      %v668 = vsel %vm644, -inf, %v523
      %v669 = vsel %vm645, -inf, %v525
      %v670 = vsel %vm646, -inf, %v593
      %v671 = vsel %vm647, -inf, %v529
      %v672 = vsel %vm648, -inf, %v531
      %v673 = vsel %vm649, -inf, %v598
      %v674 = vsel %vm650, -inf, %v533
      %v675 = vsel %vm651, -inf, %v535
      %v676 = vsel %vm652, -inf, %v601
      %v677 = vsel %vm653, -inf, %v539
      %v678 = vsel %vm654, -inf, %v541
      %v679 = vsel %vm655, -inf, %v606
      %v680 = vsel %vm656, -inf, %v543
      %v681 = vsel %vm657, -inf, %v545
      %v682 = vsel %vm658, -inf, %v609
      %v683 = vmax.f32 %v659, %v660
      %v684 = vmax.f32 %v683, %v661
      %685 = vmax.xlane.f32.xlu0 %v684
      %v686 = vpop.xlane.xlu0 %685
      %v687 = vmax.f32 %v662, %v663
      %v688 = vmax.f32 %v687, %v664
      %689 = vmax.xlane.f32.xlu0 %v688
      %v690 = vpop.xlane.xlu0 %689
      %v691 = vmax.f32 %v665, %v666
      %v692 = vmax.f32 %v691, %v667
      %693 = vmax.xlane.f32.xlu0 %v692
      %v694 = vpop.xlane.xlu0 %693
      %v695 = vmax.f32 %v668, %v669
      %v696 = vmax.f32 %v695, %v670
      %697 = vmax.xlane.f32.xlu0 %v696
      %v698 = vpop.xlane.xlu0 %697
      %v699 = vmax.f32 %v671, %v672
      %v700 = vmax.f32 %v699, %v673
      %701 = vmax.xlane.f32.xlu0 %v700
      %v702 = vpop.xlane.xlu0 %701
      %v703 = vmax.f32 %v674, %v675
      %v704 = vmax.f32 %v703, %v676
      %705 = vmax.xlane.f32.xlu0 %v704
      %v706 = vpop.xlane.xlu0 %705
      %v707 = vmax.f32 %v677, %v678
      %v708 = vmax.f32 %v707, %v679
      %709 = vmax.xlane.f32.xlu0 %v708
      %v710 = vpop.xlane.xlu0 %709
      %v711 = vmax.f32 %v680, %v681
      %v712 = vmax.f32 %v711, %v682
      %713 = vmax.xlane.f32.xlu0 %v712
      %v714 = vpop.xlane.xlu0 %713
      %vm715 = vcmp.ge.f32.partialorder %v659, %v686
      %vm716 = vcmp.ge.f32.partialorder %v660, %v686
      %vm717 = vcmp.ge.f32.partialorder %v661, %v686
      %vm718 = vcmp.ge.f32.partialorder %v662, %v690
      %vm719 = vcmp.ge.f32.partialorder %v663, %v690
      %vm720 = vcmp.ge.f32.partialorder %v664, %v690
      %vm721 = vcmp.ge.f32.partialorder %v665, %v694
      %vm722 = vcmp.ge.f32.partialorder %v666, %v694
      %vm723 = vcmp.ge.f32.partialorder %v667, %v694
      %vm724 = vcmp.ge.f32.partialorder %v668, %v698
      %vm725 = vcmp.ge.f32.partialorder %v669, %v698
      %vm726 = vcmp.ge.f32.partialorder %v670, %v698
      %vm727 = vcmp.ge.f32.partialorder %v671, %v702
      %vm728 = vcmp.ge.f32.partialorder %v672, %v702
      %vm729 = vcmp.ge.f32.partialorder %v673, %v702
      %vm730 = vcmp.ge.f32.partialorder %v674, %v706
      %vm731 = vcmp.ge.f32.partialorder %v675, %v706
      %vm732 = vcmp.ge.f32.partialorder %v676, %v706
      %vm733 = vcmp.ge.f32.partialorder %v677, %v710
      %vm734 = vcmp.ge.f32.partialorder %v678, %v710
      %vm735 = vcmp.ge.f32.partialorder %v679, %v710
      %vm736 = vcmp.ge.f32.partialorder %v680, %v714
      %vm737 = vcmp.ge.f32.partialorder %v681, %v714
      %vm738 = vcmp.ge.f32.partialorder %v682, %v714
      %v739 = vsel %vm715, %v632, 384
      %v740 = vsel %vm716, %v633, 384
      %v741 = vsel %vm717, %v634, 384
      %v742 = vsel %vm718, %v632, 384
      %v743 = vsel %vm719, %v633, 384
      %v744 = vsel %vm720, %v634, 384
      %v745 = vsel %vm721, %v632, 384
      %v746 = vsel %vm722, %v633, 384
      %v747 = vsel %vm723, %v634, 384
      %v748 = vsel %vm724, %v632, 384
      %v749 = vsel %vm725, %v633, 384
      %v750 = vsel %vm726, %v634, 384
      %v751 = vsel %vm727, %v632, 384
      %v752 = vsel %vm728, %v633, 384
      %v753 = vsel %vm729, %v634, 384
      %v754 = vsel %vm730, %v632, 384
      %v755 = vsel %vm731, %v633, 384
      %v756 = vsel %vm732, %v634, 384
      %v757 = vsel %vm733, %v632, 384
      %v758 = vsel %vm734, %v633, 384
      %v759 = vsel %vm735, %v634, 384
      %v760 = vsel %vm736, %v632, 384
      %v761 = vsel %vm737, %v633, 384
      %v762 = vsel %vm738, %v634, 384
      %vm763 = vcmp.lt.s32.totalorder %v739, %v740
      %v764 = vsel %vm763, %v739, %v740
      %vm765 = vcmp.lt.s32.totalorder %v764, %v741
      %v766 = vsel %vm765, %v764, %v741
      %v767 = vand.u32 %v766, 65535
      %v768 = vshra.s32 %v766, 16
      %v769 = vcvt.s32.f32 %v767
      %v770 = vcvt.s32.f32 %v768
      %771 = vmin.xlane.f32.xlu0 %v770
      %v772 = vpop.xlane.xlu0 %771
      %vm773 = vcmp.eq.f32.partialorder %v770, %v772
      %v774 = vsel %vm773, %v769, inf
      %775 = vmin.xlane.f32.xlu0 %v774
      %v776 = vpop.xlane.xlu0 %775
      %v777 = vcvt.f32.s32 %v776
      %v778 = vcvt.f32.s32 %v772
      %v779 = vshll.u32 %v778, 16
      %v780 = vadd.s32 %v779, %v777
      %vm781 = vcmp.lt.s32.totalorder %v742, %v743
      %v782 = vsel %vm781, %v742, %v743
      %vm783 = vcmp.lt.s32.totalorder %v782, %v744
      %v784 = vsel %vm783, %v782, %v744
      %v785 = vand.u32 %v784, 65535
      %v786 = vshra.s32 %v784, 16
      %v787 = vcvt.s32.f32 %v785
      %v788 = vcvt.s32.f32 %v786
      %789 = vmin.xlane.f32.xlu0 %v788
      %v790 = vpop.xlane.xlu0 %789
      %vm791 = vcmp.eq.f32.partialorder %v788, %v790
      %v792 = vsel %vm791, %v787, inf
      %793 = vmin.xlane.f32.xlu0 %v792
      %v794 = vpop.xlane.xlu0 %793
      %v795 = vcvt.f32.s32 %v794
      %v796 = vcvt.f32.s32 %v790
      %v797 = vshll.u32 %v796, 16
      %v798 = vadd.s32 %v797, %v795
      %vm799 = vcmp.lt.s32.totalorder %v745, %v746
      %v800 = vsel %vm799, %v745, %v746
      %vm801 = vcmp.lt.s32.totalorder %v800, %v747
      %v802 = vsel %vm801, %v800, %v747
      %v803 = vand.u32 %v802, 65535
      %v804 = vshra.s32 %v802, 16
      %v805 = vcvt.s32.f32 %v803
      %v806 = vcvt.s32.f32 %v804
      %807 = vmin.xlane.f32.xlu0 %v806
      %v808 = vpop.xlane.xlu0 %807
      %vm809 = vcmp.eq.f32.partialorder %v806, %v808
      %v810 = vsel %vm809, %v805, inf
      %811 = vmin.xlane.f32.xlu0 %v810
      %v812 = vpop.xlane.xlu0 %811
      %v813 = vcvt.f32.s32 %v812
      %v814 = vcvt.f32.s32 %v808
      %v815 = vshll.u32 %v814, 16
      %v816 = vadd.s32 %v815, %v813
      %vm817 = vcmp.lt.s32.totalorder %v748, %v749
      %v818 = vsel %vm817, %v748, %v749
      %vm819 = vcmp.lt.s32.totalorder %v818, %v750
      %v820 = vsel %vm819, %v818, %v750
      %v821 = vand.u32 %v820, 65535
      %v822 = vshra.s32 %v820, 16
      %v823 = vcvt.s32.f32 %v821
      %v824 = vcvt.s32.f32 %v822
      %825 = vmin.xlane.f32.xlu0 %v824
      %v826 = vpop.xlane.xlu0 %825
      %vm827 = vcmp.eq.f32.partialorder %v824, %v826
      %v828 = vsel %vm827, %v823, inf
      %829 = vmin.xlane.f32.xlu0 %v828
      %v830 = vpop.xlane.xlu0 %829
      %v831 = vcvt.f32.s32 %v830
      %v832 = vcvt.f32.s32 %v826
      %v833 = vshll.u32 %v832, 16
      %v834 = vadd.s32 %v833, %v831
      %vm835 = vcmp.lt.s32.totalorder %v751, %v752
      %v836 = vsel %vm835, %v751, %v752
      %vm837 = vcmp.lt.s32.totalorder %v836, %v753
      %v838 = vsel %vm837, %v836, %v753
      %v839 = vand.u32 %v838, 65535
      %v840 = vshra.s32 %v838, 16
      %v841 = vcvt.s32.f32 %v839
      %v842 = vcvt.s32.f32 %v840
      %843 = vmin.xlane.f32.xlu0 %v842
      %v844 = vpop.xlane.xlu0 %843
      %vm845 = vcmp.eq.f32.partialorder %v842, %v844
      %v846 = vsel %vm845, %v841, inf
      %847 = vmin.xlane.f32.xlu0 %v846
      %v848 = vpop.xlane.xlu0 %847
      %v849 = vcvt.f32.s32 %v848
      %v850 = vcvt.f32.s32 %v844
      %v851 = vshll.u32 %v850, 16
      %v852 = vadd.s32 %v851, %v849
      %vm853 = vcmp.lt.s32.totalorder %v754, %v755
      %v854 = vsel %vm853, %v754, %v755
      %vm855 = vcmp.lt.s32.totalorder %v854, %v756
      %v856 = vsel %vm855, %v854, %v756
      %v857 = vand.u32 %v856, 65535
      %v858 = vshra.s32 %v856, 16
      %v859 = vcvt.s32.f32 %v857
      %v860 = vcvt.s32.f32 %v858
      %861 = vmin.xlane.f32.xlu0 %v860
      %v862 = vpop.xlane.xlu0 %861
      %vm863 = vcmp.eq.f32.partialorder %v860, %v862
      %v864 = vsel %vm863, %v859, inf
      %865 = vmin.xlane.f32.xlu0 %v864
      %v866 = vpop.xlane.xlu0 %865
      %v867 = vcvt.f32.s32 %v866
      %v868 = vcvt.f32.s32 %v862
      %v869 = vshll.u32 %v868, 16
      %v870 = vadd.s32 %v869, %v867
      %vm871 = vcmp.lt.s32.totalorder %v757, %v758
      %v872 = vsel %vm871, %v757, %v758
      %vm873 = vcmp.lt.s32.totalorder %v872, %v759
      %v874 = vsel %vm873, %v872, %v759
      %v875 = vand.u32 %v874, 65535
      %v876 = vshra.s32 %v874, 16
      %v877 = vcvt.s32.f32 %v875
      %v878 = vcvt.s32.f32 %v876
      %879 = vmin.xlane.f32.xlu0 %v878
      %v880 = vpop.xlane.xlu0 %879
      %vm881 = vcmp.eq.f32.partialorder %v878, %v880
      %v882 = vsel %vm881, %v877, inf
      %883 = vmin.xlane.f32.xlu0 %v882
      %v884 = vpop.xlane.xlu0 %883
      %v885 = vcvt.f32.s32 %v884
      %v886 = vcvt.f32.s32 %v880
      %v887 = vshll.u32 %v886, 16
      %v888 = vadd.s32 %v887, %v885
      %vm889 = vcmp.lt.s32.totalorder %v760, %v761
      %v890 = vsel %vm889, %v760, %v761
      %vm891 = vcmp.lt.s32.totalorder %v890, %v762
      %v892 = vsel %vm891, %v890, %v762
      %v893 = vand.u32 %v892, 65535
      %v894 = vshra.s32 %v892, 16
      %v895 = vcvt.s32.f32 %v893
      %v896 = vcvt.s32.f32 %v894
      %897 = vmin.xlane.f32.xlu0 %v896
      %v898 = vpop.xlane.xlu0 %897
      %vm899 = vcmp.eq.f32.partialorder %v896, %v898
      %v900 = vsel %vm899, %v895, inf
      %901 = vmin.xlane.f32.xlu0 %v900
      %v902 = vpop.xlane.xlu0 %901
      %v903 = vcvt.f32.s32 %v902
      %v904 = vcvt.f32.s32 %v898
      %v905 = vshll.u32 %v904, 16
      %v906 = vadd.s32 %v905, %v903
      %v907 = vadd.f32 %v295, 1.0
      %v908 = vadd.f32 %v297, 1.0
      %v909 = vadd.f32 %v299, 1.0
      %v910 = vadd.f32 %v301, 1.0
      %v911 = vadd.f32 %v303, 1.0
      %v912 = vadd.f32 %v305, 1.0
      %v913 = vadd.f32 %v307, 1.0
      %v914 = vadd.f32 %v309, 1.0
      %v915 = vmul.f32 %v686, 2.0
      %v916 = vmul.f32 %v690, 2.0
      %v917 = vmul.f32 %v694, 2.0
      %v918 = vmul.f32 %v698, 2.0
      %v919 = vmul.f32 %v702, 2.0
      %v920 = vmul.f32 %v706, 2.0
      %v921 = vmul.f32 %v710, 2.0
      %v922 = vmul.f32 %v714, 2.0
      %v923 = vsub.f32 %v907, %v915
      %v924 = vsub.f32 %v908, %v916
      %v925 = vsub.f32 %v909, %v917
      %v926 = vsub.f32 %v910, %v918
      %v927 = vsub.f32 %v911, %v919
      %v928 = vsub.f32 %v912, %v920
      %v929 = vsub.f32 %v913, %v921
      %v930 = vsub.f32 %v914, %v922
      %v931 = vmax.f32 %v923, 0.0
      %v932 = vmax.f32 %v924, 0.0
      %v933 = vmax.f32 %v925, 0.0
      %v934 = vmax.f32 %v926, 0.0
      %v935 = vmax.f32 %v927, 0.0
      %v936 = vmax.f32 %v928, 0.0
      %v937 = vmax.f32 %v929, 0.0
      %v938 = vmax.f32 %v930, 0.0
      %v939 = vsub.f32 %v271, %v931
      %v940 = vsub.f32 %v273, %v932
      %v941 = vsub.f32 %v275, %v933
      %v942 = vsub.f32 %v277, %v934
      %v943 = vsub.f32 %v279, %v935
      %v944 = vsub.f32 %v281, %v936
      %v945 = vsub.f32 %v283, %v937
      %v946 = vsub.f32 %v285, %v938
      %v947 = vadd.f32 %v939, 0.0
      %v948 = vadd.f32 %v940, 0.0
      %v949 = vadd.f32 %v941, 0.0
      %v950 = vadd.f32 %v942, 0.0
      %v951 = vadd.f32 %v943, 0.0
      %v952 = vadd.f32 %v944, 0.0
      %v953 = vadd.f32 %v945, 0.0
      %v954 = vadd.f32 %v946, 0.0
      %v955 = vmax.f32 %v947, 0.0
      %v956 = vmax.f32 %v948, 0.0
      %v957 = vmax.f32 %v949, 0.0
      %v958 = vmax.f32 %v950, 0.0
      %v959 = vmax.f32 %v951, 0.0
      %v960 = vmax.f32 %v952, 0.0
      %v961 = vmax.f32 %v953, 0.0
      %v962 = vmax.f32 %v954, 0.0
      %vm963 = vcmask 7168
      %964 = vst.msk [vmem:[%s229] sm:$0xff] %vm963, %v955
      %965 = vst.msk [vmem:[%s229 + $0x8] sm:$0xff] %vm963, %v956
      %966 = vst.msk [vmem:[%s229 + $0x10] sm:$0xff] %vm963, %v957
      %967 = vst.msk [vmem:[%s229 + $0x18] sm:$0xff] %vm963, %v958
      %968 = vst.msk [vmem:[%s229 + $0x20] sm:$0xff] %vm963, %v959
      %969 = vst.msk [vmem:[%s229 + $0x28] sm:$0xff] %vm963, %v960
      %970 = vst.msk [vmem:[%s229 + $0x30] sm:$0xff] %vm963, %v961
      %971 = vst.msk [vmem:[%s229 + $0x38] sm:$0xff] %vm963, %v962
      %972 = vst.msk [vmem:[%s235] sm:$0xff] %vm963, %v780
      %973 = vst.msk [vmem:[%s235 + $0x8] sm:$0xff] %vm963, %v798
      %974 = vst.msk [vmem:[%s235 + $0x10] sm:$0xff] %vm963, %v816
      %975 = vst.msk [vmem:[%s235 + $0x18] sm:$0xff] %vm963, %v834
      %976 = vst.msk [vmem:[%s235 + $0x20] sm:$0xff] %vm963, %v852
      %977 = vst.msk [vmem:[%s235 + $0x28] sm:$0xff] %vm963, %v870
      %978 = vst.msk [vmem:[%s235 + $0x30] sm:$0xff] %vm963, %v888
      %979 = vst.msk [vmem:[%s235 + $0x38] sm:$0xff] %vm963, %v906
      %s980 = smul.u32 8, %s16
      %p981 = scmp.lt.s32.totalorder %s980, 47
      %s982 = scalar_select %p981, %s980, 47
      %s983 = smul.addr %s982, 8
      %s984 = scalar_lea.vmem %s3, %s983
      %s985 = smul.u32 8, %s16
      %p986 = scmp.lt.s32.totalorder %s985, 47
      %s987 = scalar_select %p986, %s985, 47
      %s988 = smul.addr %s987, 8
      %s989 = scalar_lea.vmem %s4, %s988
      // Predicated region
      $region33: #{triplet_loss_pallas.1} parent=31 // pred_check
        %p990 = pneg %p107
      $region34: #{triplet_loss_pallas.1} parent=31 // pred_check_branch
        %992 = sbr.rel (%p990) target = $region36
      $region35: #{triplet_loss_pallas.1} parent=31 // pred_region
        %s993 = smul.u32 8, %s16
      $region36: #{triplet_loss_pallas.1} parent=31 // pred_fallthru
        _
      // Predicated region
      $region37: #{triplet_loss_pallas.1} parent=31 // pred_check
        %p994 = pneg %p133
      $region38: #{triplet_loss_pallas.1} parent=31 // pred_check_branch
        %996 = sbr.rel (%p994) target = $region40
      $region39: #{triplet_loss_pallas.1} parent=31 // pred_region
        %s997 = smul.u32 8, %s16
      $region40: #{triplet_loss_pallas.1} parent=31 // pred_fallthru
        _
    $region32: #{triplet_loss_pallas.1} parent=5 // pred_fallthru
      _
    %p998 = scmp.le.s32.totalorder 2, %s11
    // Predicated region
    $region41: #{triplet_loss_pallas.1} parent=5 // pred_check
      %p999 = pneg %p998
    $region42: #{triplet_loss_pallas.1} parent=5 // pred_check_branch
      %1001 = sbr.rel (%p999) target = $region44
    $region43: #{triplet_loss_pallas.1} parent=5 // pred_region
      %s1002 = ssub.s32 %s11, 2
      // Predicated region
      $region45: #{triplet_loss_pallas.1} parent=43 // pred_check
        %p1003 = pneg %p113
      $region46: #{triplet_loss_pallas.1} parent=43 // pred_check_branch
        %1005 = sbr.rel (%p1003) target = $region48
      $region47: #{triplet_loss_pallas.1} parent=43 // pred_region
        %s1006 = smul.u32 8, %s17
        %p1007 = scmp.lt.s32.totalorder %s1006, 47
        %s1008 = scalar_select %p1007, %s1006, 47
        %s1009 = smul.addr %s1008, 8
        %s1010 = scalar_lea.vmem %s3, %s1009
      $region48: #{triplet_loss_pallas.1} parent=43 // pred_fallthru
        _
      // Predicated region
      $region49: #{triplet_loss_pallas.1} parent=43 // pred_check
        %p1011 = pneg %p139
      $region50: #{triplet_loss_pallas.1} parent=43 // pred_check_branch
        %1013 = sbr.rel (%p1011) target = $region52
      $region51: #{triplet_loss_pallas.1} parent=43 // pred_region
        %s1014 = smul.u32 8, %s17
        %p1015 = scmp.lt.s32.totalorder %s1014, 47
        %s1016 = scalar_select %p1015, %s1014, 47
        %s1017 = smul.addr %s1016, 8
        %s1018 = scalar_lea.vmem %s4, %s1017
      $region52: #{triplet_loss_pallas.1} parent=43 // pred_fallthru
        _
    $region44: #{triplet_loss_pallas.1} parent=5 // pred_fallthru
      _
  $region6: #{triplet_loss_pallas.1} parent=0 // loop_footer
    %s15 = sadd.s32 1, %s11
  $region7: #{triplet_loss_pallas.1} parent=0 // loop_footer_branch
    %10 = sbr.rel target = $region3
  $region8: #{triplet_loss_pallas.1} parent=0 // loop_exit
    _

</llo_original>
